<compile_context>
chip_gen: v7x
topology: tpu7x:2x2x1
jax: 0.10.0
libtpu: 0.0.40
codegen_flags: <defaults>
</compile_context>

<pallas_src>
import functools

import jax
import jax.numpy as jnp
from jax.experimental import pallas as pl
from jax.experimental.pallas import tpu as pltpu


# ----------------------------- tuning knobs -------------------------------- #
# Folded-slab f32 footprint below which the fully fused single-kernel path is
# used (one HBM read + one write instead of the two-pass path's 2R + 1W).
# TODO(synk): raise further (16+ MiB) once the fused kernel gets an internal
#             row-tile pipeline so the whole-slab DMA overlaps the stats math.
_FAST_PATH_MAX_BYTES = 6 * 1024 * 1024

# Per-block budget for the tiled path, measured in *input dtype* bytes
# (bf16 gets more rows per block), plus a cap on the per-block f32 upcast
# footprint so in-kernel temporaries stay comfortably inside VMEM.
_BLOCK_BYTES = 4 * 1024 * 1024
_BLOCK_F32_CAP_BYTES = 6 * 1024 * 1024

# Explicit scoped-VMEM limits (v7x physical VMEM is 64 MiB/TC, v5e/v6e 128 MiB;
# worst-case in-kernel footprint at the block sizes above is ~30 MiB).
_FUSED_VMEM_LIMIT = 48 * 1024 * 1024
_TILED_VMEM_LIMIT = 48 * 1024 * 1024

# Leading "parallel" shard axis for the stats reduction: splits the HBM sweep
# across v7x's two TensorCores; degenerates to a trivial serial outer loop on
# single-core v5e / v6e.
_NUM_STATS_SHARDS = 2


# ----------------------------- Pallas kernels ------------------------------ #

def _fused_bn_kernel(x_ref, g_ref, b_ref, o_ref, *, c, fold, n_rows, eps):
    """Whole-slab fused batch norm: stats + scale/shift + normalize.

    x_ref: (Mf, Cl) folded slab, Cl = fold * c.  g_ref/b_ref: (1, Cl) f32,
    gamma/beta tiled across the fold groups.  Statistics are per channel over
    all n_rows original rows.
    """
    x = x_ref[...].astype(jnp.float32)                    # (Mf, Cl)
    s = jnp.sum(x, axis=0, keepdims=True)                 # (1, Cl) per (group, ch)
    q = jnp.sum(x * x, axis=0, keepdims=True)             # (1, Cl)

    if fold > 1:
        # Combine the `fold` channel groups packed along the lane axis and
        # re-tile the per-channel totals back across all Cl lanes with a tiny
        # MXU matmul: comb[i, j] = 1 iff lanes i and j hold the same channel.
        # TODO(synk): replace with log2(fold) pltpu.roll-and-add steps (XLU)
        #             to avoid MXU spin-up on this latency-sensitive path.
        cl = c * fold
        ii = jax.lax.broadcasted_iota(jnp.int32, (cl, cl), 0)
        jj = jax.lax.broadcasted_iota(jnp.int32, (cl, cl), 1)
        comb = ((ii % c) == (jj % c)).astype(jnp.float32)
        s = jnp.dot(s, comb, preferred_element_type=jnp.float32)
        q = jnp.dot(q, comb, preferred_element_type=jnp.float32)

    n = jnp.float32(n_rows)
    mean = s / n
    var = q / n - mean * mean                             # biased (training) var
    inv_std = jax.lax.rsqrt(var + jnp.float32(eps))
    scale = g_ref[...] * inv_std
    shift = b_ref[...] - mean * scale
    o_ref[...] = (x * scale + shift).astype(o_ref.dtype)


def _stats_kernel(x_ref, sum_ref, sq_ref, *, row_tile, total_rows,
                  steps_per_shard):
    """Accumulate per-lane sum / sum-of-squares across row blocks.

    Grid is (shards, blocks-per-shard); the leading axis is "parallel" so v7x
    runs one shard per TensorCore.  sum_ref / sq_ref are this shard's (1, Cl)
    accumulators (VMEM-resident across the inner "arbitrary" axis).  The
    tail-row mask only runs on the single global last block (pl.when), keeping
    the hot loop free of extra VALU work.
    """
    step = pl.program_id(1)
    gi = pl.program_id(0) * steps_per_shard + step        # global row-block idx

    @pl.when(step == 0)
    def _init():
        sum_ref[...] = jnp.zeros_like(sum_ref)
        sq_ref[...] = jnp.zeros_like(sq_ref)

    x = x_ref[...].astype(jnp.float32)                    # (row_tile, Cl)

    def _accum(xv):
        sum_ref[...] += jnp.sum(xv, axis=0, keepdims=True)
        sq_ref[...] += jnp.sum(xv * xv, axis=0, keepdims=True)

    if total_rows % row_tile != 0:
        last = (total_rows + row_tile - 1) // row_tile - 1   # static

        @pl.when(gi != last)
        def _body():
            _accum(x)

        @pl.when(gi == last)
        def _tail():
            # cdiv grid: out-of-bounds tail rows of the last block contain
            # undefined VMEM data -> zero them before accumulating.
            rows_left = total_rows - gi * row_tile
            rid = jax.lax.broadcasted_iota(jnp.int32, x.shape, 0)
            _accum(jnp.where(rid < rows_left, x, 0.0))
    else:
        _accum(x)


def _normalize_kernel(x_ref, scale_ref, shift_ref, o_ref):
    """y = x * scale + shift  (scale/shift are (1, Cl), broadcast over rows).

    Tail blocks compute on undefined OOB rows; Pallas only writes back the
    in-range rows of the last cdiv block.
    """
    x = x_ref[...].astype(jnp.float32)
    o_ref[...] = (x * scale_ref[...] + shift_ref[...]).astype(o_ref.dtype)


# ------------------------------- helpers ----------------------------------- #

def _fold_channels(x2d):
    """Fold (M, C) -> (M//fold, fold*C) to densify the lane axis.

    Uses the largest power-of-two fold that divides both 128/C and M, so an
    awkward M still gets partial lane-folding instead of none.
    """
    m, c = x2d.shape
    fold = 1
    if c < 128 and 128 % c == 0:
        f = 128 // c                       # power of two
        while f > 1 and m % f != 0:
            f //= 2
        fold = f
    if fold > 1:
        x2d = x2d.reshape(m // fold, c * fold)
    return x2d, fold


def _pick_row_tile(mf, cl, itemsize, requested):
    """Largest 8-multiple row tile within the per-block budgets.

    Budget is measured in input-dtype bytes (so bf16 gets bigger blocks),
    capped by the block's f32-upcast footprint so double-buffered in+out plus
    in-kernel f32 temporaries stay within the explicit vmem_limit_bytes on
    every generation (v7x's 64 MiB physical VMEM is the binding cap).
    """
    rows_dtype = _BLOCK_BYTES // (cl * itemsize)
    rows_f32 = _BLOCK_F32_CAP_BYTES // (cl * 4)
    max_rows = max(8, (min(rows_dtype, rows_f32) // 8) * 8)
    rt = min(requested, max_rows)
    rt = min(rt, ((mf + 7) // 8) * 8)      # never bigger than the slab height
    rt = max(8, (rt // 8) * 8)
    return rt


# ------------------------------- wrappers ---------------------------------- #

def _batchnorm_lastaxis_2d(x2d, gamma, beta, eps, row_tile):
    """Training-mode batch norm over the channel (last) axis of an (M, C) slab."""
    M, C = x2d.shape
    g32 = gamma.astype(jnp.float32)
    b32 = beta.astype(jnp.float32)

    # Lane-dense folding: (M, C) -> (Mf, Cl); gamma/beta tiled to match.
    x_f, fold = _fold_channels(x2d)
    Mf, Cl = x_f.shape
    gt = jnp.tile(g32, fold)[None, :]                      # (1, Cl)
    bt = jnp.tile(b32, fold)[None, :]                      # (1, Cl)

    # ---- fast path: small/medium slab -> single fused kernel in VMEM ----
    if Mf * Cl * 4 <= _FAST_PATH_MAX_BYTES:
        y_f = pl.pallas_call(
            functools.partial(_fused_bn_kernel, c=C, fold=fold, n_rows=M, eps=eps),
            out_shape=jax.ShapeDtypeStruct((Mf, Cl), x2d.dtype),
            compiler_params=pltpu.CompilerParams(
                vmem_limit_bytes=_FUSED_VMEM_LIMIT),
        )(x_f, gt, bt)
        return y_f.reshape(M, C)

    # ---- general path: two lane-dense pipelined passes ----
    itemsize = jnp.dtype(x2d.dtype).itemsize
    rt = _pick_row_tile(Mf, Cl, itemsize, row_tile)
    nb = pl.cdiv(Mf, rt)                                   # total row blocks

    # Shard the reduction across TensorCores when the block count splits evenly
    # (v7x megacore; a trivial serial outer loop on v5e/v6e).
    ns = _NUM_STATS_SHARDS if (nb % _NUM_STATS_SHARDS == 0
                               and nb >= 2 * _NUM_STATS_SHARDS) else 1
    steps = nb // ns

    # Pass 1: per-shard per-lane sum / sum-of-squares reduction.
    sums, sqs = pl.pallas_call(
        functools.partial(_stats_kernel, row_tile=rt, total_rows=Mf,
                          steps_per_shard=steps),
        out_shape=(
            jax.ShapeDtypeStruct((ns, 1, Cl), jnp.float32),
            jax.ShapeDtypeStruct((ns, 1, Cl), jnp.float32),
        ),
        grid_spec=pltpu.PrefetchScalarGridSpec(
            num_scalar_prefetch=0,
            grid=(ns, steps),
            in_specs=[pl.BlockSpec((rt, Cl), lambda s, i: (s * steps + i, 0))],
            out_specs=(
                pl.BlockSpec((None, 1, Cl), lambda s, i: (s, 0, 0)),
                pl.BlockSpec((None, 1, Cl), lambda s, i: (s, 0, 0)),
            ),
        ),
        compiler_params=pltpu.CompilerParams(
            dimension_semantics=("parallel", "arbitrary"),
            vmem_limit_bytes=_TILED_VMEM_LIMIT),
    )(x_f)

    # Tiny O(C) glue: combine shard partials, un-fold the lane groups, compute
    # per-channel scale/shift, re-tile to the folded lane layout.  Negligible
    # next to the HBM sweeps at the sizes that reach this path.
    sums = jnp.sum(sums, axis=(0, 1))                      # (Cl,)
    sqs = jnp.sum(sqs, axis=(0, 1))
    if fold > 1:
        sums = sums.reshape(fold, C).sum(axis=0)           # (C,)
        sqs = sqs.reshape(fold, C).sum(axis=0)
    n = jnp.float32(M)
    mean = sums / n
    var = sqs / n - mean * mean                            # biased variance
    inv_std = jax.lax.rsqrt(var + jnp.float32(eps))
    scale = g32 * inv_std
    shift = b32 - mean * scale
    scale_t = jnp.tile(scale, fold)[None, :]               # (1, Cl)
    shift_t = jnp.tile(shift, fold)[None, :]

    # Pass 2: lane-dense elementwise normalize ("parallel" -> split across
    # v7x's cores automatically).
    y_f = pl.pallas_call(
        _normalize_kernel,
        out_shape=jax.ShapeDtypeStruct((Mf, Cl), x2d.dtype),
        grid_spec=pltpu.PrefetchScalarGridSpec(
            num_scalar_prefetch=0,
            grid=(nb,),
            in_specs=[
                pl.BlockSpec((rt, Cl), lambda i: (i, 0)),
                pl.BlockSpec((1, Cl), lambda i: (0, 0)),
                pl.BlockSpec((1, Cl), lambda i: (0, 0)),
            ],
            out_specs=pl.BlockSpec((rt, Cl), lambda i: (i, 0)),
        ),
        compiler_params=pltpu.CompilerParams(
            dimension_semantics=("parallel",),
            vmem_limit_bytes=_TILED_VMEM_LIMIT),
    )(x_f, scale_t, shift_t)
    return y_f.reshape(M, C)


@functools.partial(jax.jit, static_argnames=("eps", "row_tile"))
def replace_batch_norm(x, gamma, beta, *, eps=1e-5, row_tile=8192):
    """JAX/Pallas equivalent of ReplaceBatchNorm.forward (training-mode stats).

    x is channels-last: rank 3 -> (B, L, C), rank 4 -> (B, H, W, C),
    otherwise identity (matches the module's nn.Identity branch).
    """
    if x.ndim == 3:
        B, L, C = x.shape
        y = _batchnorm_lastaxis_2d(x.reshape(B * L, C), gamma, beta, eps, row_tile)
        return y.reshape(B, L, C)
    elif x.ndim == 4:
        B, H, W, C = x.shape
        y = _batchnorm_lastaxis_2d(x.reshape(B * H * W, C), gamma, beta, eps,
                                   row_tile)
        return y.reshape(B, H, W, C)
    else:
        return x  # nn.Identity() branch


# ------------------------------ reference ---------------------------------- #

def _reference(x, gamma, beta, eps=1e-5):
    if x.ndim not in (3, 4):
        return x
    axes = tuple(range(x.ndim - 1))  # all but channel
    xf = x.astype(jnp.float32)
    mean = jnp.mean(xf, axis=axes, keepdims=True)
    var = jnp.mean((xf - mean) ** 2, axis=axes, keepdims=True)
    return ((xf - mean) * jax.lax.rsqrt(var + eps) * gamma + beta).astype(x.dtype)


# --------------------------------- main ------------------------------------ #

if __name__ == "__main__":
    key = jax.random.PRNGKey(0)
    k1, k2, k3, k4, k5 = jax.random.split(key, 5)

    num_features = 32
    # Fresh nn.BatchNorm defaults: weight=1, bias=0 (deterministic init).
    gamma = jnp.ones((num_features,), jnp.float32)
    beta = jnp.zeros((num_features,), jnp.float32)

    # 4D channels-last input (B, H, W, C) -> fused fast path, full fold (Cl=128).
    x4 = jax.random.normal(k1, (2, 8, 8, num_features), dtype=jnp.float32)
    y4 = jax.block_until_ready(replace_batch_norm(x4, gamma, beta))
    assert jnp.allclose(y4, _reference(x4, gamma, beta), atol=1e-4, rtol=1e-4), \
        "4D mismatch"

    # 3D channels-last input (B, L, C) -> fused fast path.
    x3 = jax.random.normal(k2, (2, 64, num_features), dtype=jnp.float32)
    y3 = jax.block_until_ready(replace_batch_norm(x3, gamma, beta))
    assert jnp.allclose(y3, _reference(x3, gamma, beta), atol=1e-4, rtol=1e-4), \
        "3D mismatch"

    # Awkward row count (M=126): exercises the partial lane-fold (fold=2, Cl=64).
    xp = jax.random.normal(k3, (2, 7, 9, num_features), dtype=jnp.float32)
    yp = jax.block_until_ready(replace_batch_norm(xp, gamma, beta))
    assert jnp.allclose(yp, _reference(xp, gamma, beta), atol=1e-4, rtol=1e-4), \
        "partial-fold mismatch"

    # bf16 input -> dtype-aware path, f32 internal math.
    xb = jax.random.normal(k4, (2, 16, 16, num_features), dtype=jnp.bfloat16)
    yb = jax.block_until_ready(replace_batch_norm(xb, gamma, beta))
    assert jnp.allclose(yb.astype(jnp.float32),
                        _reference(xb, gamma, beta).astype(jnp.float32),
                        atol=2e-2, rtol=2e-2), "bf16 mismatch"

    # Larger 4D input -> exercises the tiled two-pass path with a small row_tile
    # (lane folding, core-sharded stats reduction [ns=2], cdiv grid with
    # hoisted tail-row masking: Mf=16300, 32 blocks of 512 rows).
    xl = jax.random.normal(k5, (5, 163, 80, num_features), dtype=jnp.float32)
    yl = jax.block_until_ready(replace_batch_norm(xl, gamma, beta, row_tile=512))
    assert jnp.allclose(yl, _reference(xl, gamma, beta), atol=1e-3, rtol=1e-3), \
        "tiled-path mismatch"

    # rank != 3/4 -> identity branch.
    x2 = jax.random.normal(k1, (4, num_features), dtype=jnp.float32)
    y2 = jax.block_until_ready(replace_batch_norm(x2, gamma, beta))
    assert jnp.allclose(y2, x2), "identity branch mismatch"

    print("KERNEL_OK")
</pallas_src>

<mosaic_0001>
module attributes {stable_mosaic.version = 11 : i64} {
  func.func @_fused_bn_kernel(%arg0: memref<32x128xf32, #tpu.memory_space<vmem>>, %arg1: memref<1x128xf32, #tpu.memory_space<vmem>>, %arg2: memref<1x128xf32, #tpu.memory_space<vmem>>, %arg3: memref<32x128xf32, #tpu.memory_space<vmem>>) attributes {dimension_semantics = [], scalar_prefetch = 0 : i64, scratch_operands = 0 : i64, tpu.core_type = #tpu.core_type<tc>} {
    %c0 = arith.constant 0 : index
    %c0_0 = arith.constant 0 : index
    %0 = vector.load %arg0[%c0, %c0_0] : memref<32x128xf32, #tpu.memory_space<vmem>>, vector<32x128xf32>
    %cst = arith.constant dense<0.000000e+00> : vector<128xf32>
    %1 = vector.multi_reduction <add>, %0, %cst [0] : vector<32x128xf32> to vector<128xf32>
    %2 = vector.shape_cast %1 : vector<128xf32> to vector<1x128xf32>
    %3 = arith.mulf %0, %0 : vector<32x128xf32>
    %cst_1 = arith.constant dense<0.000000e+00> : vector<128xf32>
    %4 = vector.multi_reduction <add>, %3, %cst_1 [0] : vector<32x128xf32> to vector<128xf32>
    %5 = vector.shape_cast %4 : vector<128xf32> to vector<1x128xf32>
    %6 = tpu.iota {dimensions = array<i32: 0>} : vector<128x128xi32>
    %7 = tpu.iota {dimensions = array<i32: 1>} : vector<128x128xi32>
    %c32_i32 = arith.constant 32 : i32
    %c0_i32 = arith.constant 0 : i32
    %8 = arith.cmpi eq, %c32_i32, %c0_i32 : i32
    %c1_i32 = arith.constant 1 : i32
    %9 = arith.select %8, %c1_i32, %c32_i32 : i32
    %10 = vector.broadcast %9 : i32 to vector<128x128xi32>
    %11 = arith.remsi %6, %10 : vector<128x128xi32>
    %c0_i32_2 = arith.constant 0 : i32
    %12 = vector.broadcast %c0_i32_2 : i32 to vector<128x128xi32>
    %13 = arith.cmpi ne, %11, %12 : vector<128x128xi32>
    %c0_i32_3 = arith.constant 0 : i32
    %14 = vector.broadcast %c0_i32_3 : i32 to vector<128x128xi32>
    %15 = arith.cmpi slt, %11, %14 : vector<128x128xi32>
    %c0_i32_4 = arith.constant 0 : i32
    %16 = arith.cmpi slt, %9, %c0_i32_4 : i32
    %17 = vector.broadcast %16 : i1 to vector<128x128xi1>
    %18 = vector.broadcast %17 : vector<128x128xi1> to vector<128x128xi1>
    %19 = arith.xori %15, %18 : vector<128x128xi1>
    %20 = arith.andi %19, %13 : vector<128x128xi1>
    %21 = vector.broadcast %9 : i32 to vector<128x128xi32>
    %22 = arith.addi %11, %21 : vector<128x128xi32>
    %23 = arith.select %20, %22, %11 : vector<128x128xi1>, vector<128x128xi32>
    %c32_i32_5 = arith.constant 32 : i32
    %c0_i32_6 = arith.constant 0 : i32
    %24 = arith.cmpi eq, %c32_i32_5, %c0_i32_6 : i32
    %c1_i32_7 = arith.constant 1 : i32
    %25 = arith.select %24, %c1_i32_7, %c32_i32_5 : i32
    %26 = vector.broadcast %25 : i32 to vector<128x128xi32>
    %27 = arith.remsi %7, %26 : vector<128x128xi32>
    %c0_i32_8 = arith.constant 0 : i32
    %28 = vector.broadcast %c0_i32_8 : i32 to vector<128x128xi32>
    %29 = arith.cmpi ne, %27, %28 : vector<128x128xi32>
    %c0_i32_9 = arith.constant 0 : i32
    %30 = vector.broadcast %c0_i32_9 : i32 to vector<128x128xi32>
    %31 = arith.cmpi slt, %27, %30 : vector<128x128xi32>
    %c0_i32_10 = arith.constant 0 : i32
    %32 = arith.cmpi slt, %25, %c0_i32_10 : i32
    %33 = vector.broadcast %32 : i1 to vector<128x128xi1>
    %34 = vector.broadcast %33 : vector<128x128xi1> to vector<128x128xi1>
    %35 = arith.xori %31, %34 : vector<128x128xi1>
    %36 = arith.andi %35, %29 : vector<128x128xi1>
    %37 = vector.broadcast %25 : i32 to vector<128x128xi32>
    %38 = arith.addi %27, %37 : vector<128x128xi32>
    %39 = arith.select %36, %38, %27 : vector<128x128xi1>, vector<128x128xi32>
    %40 = arith.cmpi eq, %23, %39 : vector<128x128xi32>
    %41 = arith.extui %40 : vector<128x128xi1> to vector<128x128xi32>
    %42 = arith.sitofp %41 : vector<128x128xi32> to vector<128x128xf32>
    %cst_11 = arith.constant dense<0.000000e+00> : vector<1x128xf32>
    %43 = tpu.matmul %2, %42, %cst_11 {dimension_numbers = #tpu.dot_dimension_numbers<[1], [0], [0], [1], [0, 0, 1, 1], [], []>} : vector<1x128xf32>, vector<128x128xf32>, vector<1x128xf32> -> vector<1x128xf32>
    %cst_12 = arith.constant dense<0.000000e+00> : vector<1x128xf32>
    %44 = tpu.matmul %5, %42, %cst_12 {dimension_numbers = #tpu.dot_dimension_numbers<[1], [0], [0], [1], [0, 0, 1, 1], [], []>} : vector<1x128xf32>, vector<128x128xf32>, vector<1x128xf32> -> vector<1x128xf32>
    %cst_13 = arith.constant 1.280000e+02 : f32
    %45 = vector.broadcast %cst_13 : f32 to vector<1x128xf32>
    %46 = arith.divf %43, %45 : vector<1x128xf32>
    %cst_14 = arith.constant 1.280000e+02 : f32
    %47 = vector.broadcast %cst_14 : f32 to vector<1x128xf32>
    %48 = arith.divf %44, %47 : vector<1x128xf32>
    %49 = arith.mulf %46, %46 : vector<1x128xf32>
    %50 = arith.subf %48, %49 : vector<1x128xf32>
    %cst_15 = arith.constant 9.99999974E-6 : f32
    %51 = vector.broadcast %cst_15 : f32 to vector<1x128xf32>
    %52 = arith.addf %50, %51 : vector<1x128xf32>
    %53 = math.rsqrt %52 : vector<1x128xf32>
    %c0_16 = arith.constant 0 : index
    %c0_17 = arith.constant 0 : index
    %54 = vector.load %arg1[%c0_16, %c0_17] : memref<1x128xf32, #tpu.memory_space<vmem>>, vector<1x128xf32>
    %55 = arith.mulf %54, %53 : vector<1x128xf32>
    %c0_18 = arith.constant 0 : index
    %c0_19 = arith.constant 0 : index
    %56 = vector.load %arg2[%c0_18, %c0_19] : memref<1x128xf32, #tpu.memory_space<vmem>>, vector<1x128xf32>
    %57 = arith.mulf %46, %55 : vector<1x128xf32>
    %58 = arith.subf %56, %57 : vector<1x128xf32>
    %59 = vector.broadcast %55 : vector<1x128xf32> to vector<32x128xf32>
    %60 = arith.mulf %0, %59 : vector<32x128xf32>
    %61 = vector.broadcast %58 : vector<1x128xf32> to vector<32x128xf32>
    %62 = arith.addf %60, %61 : vector<32x128xf32>
    %c0_20 = arith.constant 0 : index
    %c0_21 = arith.constant 0 : index
    %63 = vector.load %arg3[%c0_20, %c0_21] : memref<32x128xf32, #tpu.memory_space<vmem>>, vector<32x128xf32>
    tpu.vector_store %arg3[%c0_20, %c0_21], %62 {strides = array<i32>} : memref<32x128xf32, #tpu.memory_space<vmem>>, vector<32x128xf32>,
    return
  }
}

</mosaic_0001>

<llo_original>
// kernel: tile.13
$region0: #{tile.13}
  #allocation0 [shape = 's32[1]{0}', space=sflag, size = 0x4, scoped, tag = 'scoped memory for tile.13']
  %s0 = inlined_call_operand.vmem [shape: f32[32], index: 0, kind: input, shape index: {}]
  %s1 = inlined_call_operand.vmem [shape: f32[4,32], index: 1, kind: output, shape index: {}]
  // Predicated region
  $region2: #{tile.13} parent=0 // pred_check
    _
  $region3: #{tile.13} parent=0 // pred_check_branch
    %3 = sbr.rel (0) target = $region5
  $region4: #{tile.13} parent=0 // pred_region
    _
  $region5: #{tile.13} parent=0 // pred_fallthru
    _
  %v4 = vld [vmem:[%s0] ss:$0 sm:$0xff]
  %5 = vst [vmem:[%s1] sm:$0xf] %v4

// kernel: tile.14
$region0: #{tile.14}
  %s0 = inlined_call_operand.vmem [shape: f32[4,32], index: 0, kind: input, shape index: {}]
  %s1 = inlined_call_operand.vmem [shape: f32[1,128], index: 1, kind: output, shape index: {}]
  $region1: #{tile.14} parent=0
    #allocation0 [shape = 'u8[4096]{0}', space=vmem, size = 0x1000, scoped, tag = 'scoped mem for output reshape']
    #allocation1 [shape = 'u8[4096]{0}', space=vmem, size = 0x1000, scoped, tag = 'scoped mem for input reshape']
    %s3 = sshllo.u32 0, 4
    %v4 = vld [vmem:[%s0] sm:%s3]
    %5 = vst [vmem:[#allocation1] sm:%s3] %v4
    %v6 = vld [vmem:[#allocation1] sm:$0x1]
    %vm7 = vcmask 261120
    %8 = vst.msk [vmem:[#allocation0] sm:$0x1] %vm7, %v6
    %s9 = scalar_lea.vmem [#allocation1], 3
    %v10 = vld [vmem:[%s9] sm:$0x1]
    %11 = vrot.lane.b32.xlu0 %v10, 96
    %v12 = vpop.permute.xlu0 %11
    %vm13 = vcmask 1048320
    %14 = vst.msk [vmem:[#allocation0] sm:$0x1] %vm13, %v12
    %s15 = scalar_lea.vmem [#allocation1], 2
    %v16 = vld [vmem:[%s15] sm:$0x1]
    %17 = vrot.lane.b32.xlu0 %v16, 64
    %v18 = vpop.permute.xlu0 %17
    %vm19 = vcmask 785920
    %20 = vst.msk [vmem:[#allocation0] sm:$0x1] %vm19, %v18
    %s21 = scalar_lea.vmem [#allocation1], 1
    %v22 = vld [vmem:[%s21] sm:$0x1]
    %23 = vrot.lane.b32.xlu0 %v22, 32
    %v24 = vpop.permute.xlu0 %23
    %vm25 = vcmask 523520
    %26 = vst.msk [vmem:[#allocation0] sm:$0x1] %vm25, %v24
    %s28 = sshllo.u32 0, 1
    %v30 = vld [vmem:[#allocation0] sm:%s28]
    %s31 = sshllo.u32 0, 1
    %32 = vst [vmem:[%s1] sm:%s31] %v30

// kernel: replace_batch_norm.1
$region0: #{replace_batch_norm.1}
  #allocation0 [shape = 'u32[]', space=smem, size = 0x4, offset = 0x4, fixed_abs, tag = 'smem constant byte address 0x4 - core index']
  #allocation1 [shape = 'u32[144,128]{1,0:T(1,128)}', space=vmem, size = 0x12000, scoped, tag = 'internal scratch']
  %s0 = inlined_call_operand.vmem [shape: f32[32,128], index: 0, kind: input, shape index: {}]
  %s1 = inlined_call_operand.vmem [shape: f32[1,128], index: 1, kind: input, shape index: {}]
  %s2 = inlined_call_operand.vmem [shape: f32[1,128], index: 2, kind: input, shape index: {}]
  %s3 = inlined_call_operand.vmem [shape: f32[32,128], index: 3, kind: output, shape index: {}]
  %s4 = sld [smem:[#allocation0]]
  $region22: #{replace_batch_norm.1} parent=0
    _
  %s6 = ssub.s32 1, %s4
  %s7 = scalar_select 0, %s6, %s4
  // Predicated region
  $region2: #{replace_batch_norm.1} parent=0 // pred_check
    _
  $region3: #{replace_batch_norm.1} parent=0 // pred_check_branch
    %9 = sbr.rel (0) target = $region5
  $region4: #{replace_batch_norm.1} parent=0 // pred_region
    _
  $region5: #{replace_batch_norm.1} parent=0 // pred_fallthru
    _
  // Predicated region
  $region6: #{replace_batch_norm.1} parent=0 // pred_check
    _
  $region7: #{replace_batch_norm.1} parent=0 // pred_check_branch
    %11 = sbr.rel (0) target = $region9
  $region8: #{replace_batch_norm.1} parent=0 // pred_region
    _
  $region9: #{replace_batch_norm.1} parent=0 // pred_fallthru
    _
  // Predicated region
  $region10: #{replace_batch_norm.1} parent=0 // pred_check
    _
  $region11: #{replace_batch_norm.1} parent=0 // pred_check_branch
    %13 = sbr.rel (0) target = $region13
  $region12: #{replace_batch_norm.1} parent=0 // pred_region
    _
  $region13: #{replace_batch_norm.1} parent=0 // pred_fallthru
    _
  %v14 = vld [vmem:[%s0] sm:$0xff]
  %v15 = vld [vmem:[%s0 + $0x8] sm:$0xff]
  %v16 = vld [vmem:[%s0 + $0x10] sm:$0xff]
  %v17 = vld [vmem:[%s0 + $0x18] sm:$0xff]
  %v18 = vadd.f32 %v14, %v15
  %v19 = vadd.f32 %v18, %v16
  %v20 = vadd.f32 %v19, %v17
  %v21 = vrot.slane %v20, 4
  %v22 = vadd.f32 %v20, %v21
  %v23 = vrot.slane %v22, 2
  %v24 = vadd.f32 %v22, %v23
  %v25 = vrot.slane %v24, 1
  %v26 = vadd.f32 %v24, %v25
  %v27 = vmul.f32 %v14, %v14
  %v28 = vmul.f32 %v15, %v15
  %v29 = vmul.f32 %v16, %v16
  %v30 = vmul.f32 %v17, %v17
  %v31 = vadd.f32 %v27, %v28
  %v32 = vadd.f32 %v31, %v29
  %v33 = vadd.f32 %v32, %v30
  %v34 = vrot.slane %v33, 4
  %v35 = vadd.f32 %v33, %v34
  %v36 = vrot.slane %v35, 2
  %v37 = vadd.f32 %v35, %v36
  %v38 = vrot.slane %v37, 1
  %v39 = vadd.f32 %v37, %v38
  %v40 = vlaneseq
  %v41 = vshrl.u32 %v40, 7
  %v42 = vadd.s32 %v41, 8
  %v43 = vadd.s32 %v41, 16
  %v44 = vadd.s32 %v41, 24
  %v45 = vadd.s32 %v41, 32
  %v46 = vadd.s32 %v41, 40
  %v47 = vadd.s32 %v41, 48
  %v48 = vadd.s32 %v41, 56
  %v49 = vadd.s32 %v41, 64
  %v50 = vadd.s32 %v41, 72
  %v51 = vadd.s32 %v41, 80
  %v52 = vadd.s32 %v41, 88
  %v53 = vadd.s32 %v41, 96
  %v54 = vadd.s32 %v41, 104
  %v55 = vadd.s32 %v41, 112
  %v56 = vadd.s32 %v41, 120
  %v57 = vlaneseq
  %v58 = vand.u32 %v57, 127
  %vm59 = vcmp.lt.s32.totalorder %v41, 0
  %v60 = vsub.s32 0, %v41
  %v61 = vsel %vm59, %v60, %v41
  %v62 = vshrl.u32 %v61, 5
  %v63 = vand.u32 %v61, 31
  %v64 = vsub.s32 0, %v63
  %v65 = vsel %vm59, %v64, %v63
  %vm66 = vcmp.lt.s32.totalorder %v42, 0
  %v67 = vsub.s32 0, %v42
  %v68 = vsel %vm66, %v67, %v42
  %v69 = vshrl.u32 %v68, 5
  %v70 = vand.u32 %v68, 31
  %v71 = vsub.s32 0, %v70
  %v72 = vsel %vm66, %v71, %v70
  %vm73 = vcmp.lt.s32.totalorder %v43, 0
  %v74 = vsub.s32 0, %v43
  %v75 = vsel %vm73, %v74, %v43
  %v76 = vshrl.u32 %v75, 5
  %v77 = vand.u32 %v75, 31
  %v78 = vsub.s32 0, %v77
  %v79 = vsel %vm73, %v78, %v77
  %vm80 = vcmp.lt.s32.totalorder %v44, 0
  %v81 = vsub.s32 0, %v44
  %v82 = vsel %vm80, %v81, %v44
  %v83 = vshrl.u32 %v82, 5
  %v84 = vand.u32 %v82, 31
  %v85 = vsub.s32 0, %v84
  %v86 = vsel %vm80, %v85, %v84
  %vm87 = vcmp.lt.s32.totalorder %v45, 0
  %v88 = vsub.s32 0, %v45
  %v89 = vsel %vm87, %v88, %v45
  %v90 = vshrl.u32 %v89, 5
  %v91 = vand.u32 %v89, 31
  %v92 = vsub.s32 0, %v91
  %v93 = vsel %vm87, %v92, %v91
  %vm94 = vcmp.lt.s32.totalorder %v46, 0
  %v95 = vsub.s32 0, %v46
  %v96 = vsel %vm94, %v95, %v46
  %v97 = vshrl.u32 %v96, 5
  %v98 = vand.u32 %v96, 31
  %v99 = vsub.s32 0, %v98
  %v100 = vsel %vm94, %v99, %v98
  %vm101 = vcmp.lt.s32.totalorder %v47, 0
  %v102 = vsub.s32 0, %v47
  %v103 = vsel %vm101, %v102, %v47
  %v104 = vshrl.u32 %v103, 5
  %v105 = vand.u32 %v103, 31
  %v106 = vsub.s32 0, %v105
  %v107 = vsel %vm101, %v106, %v105
  %vm108 = vcmp.lt.s32.totalorder %v48, 0
  %v109 = vsub.s32 0, %v48
  %v110 = vsel %vm108, %v109, %v48
  %v111 = vshrl.u32 %v110, 5
  %v112 = vand.u32 %v110, 31
  %v113 = vsub.s32 0, %v112
  %v114 = vsel %vm108, %v113, %v112
  %vm115 = vcmp.lt.s32.totalorder %v49, 0
  %v116 = vsub.s32 0, %v49
  %v117 = vsel %vm115, %v116, %v49
  %v118 = vshrl.u32 %v117, 5
  %v119 = vand.u32 %v117, 31
  %v120 = vsub.s32 0, %v119
  %v121 = vsel %vm115, %v120, %v119
  %vm122 = vcmp.lt.s32.totalorder %v50, 0
  %v123 = vsub.s32 0, %v50
  %v124 = vsel %vm122, %v123, %v50
  %v125 = vshrl.u32 %v124, 5
  %v126 = vand.u32 %v124, 31
  %v127 = vsub.s32 0, %v126
  %v128 = vsel %vm122, %v127, %v126
  %vm129 = vcmp.lt.s32.totalorder %v51, 0
  %v130 = vsub.s32 0, %v51
  %v131 = vsel %vm129, %v130, %v51
  %v132 = vshrl.u32 %v131, 5
  %v133 = vand.u32 %v131, 31
  %v134 = vsub.s32 0, %v133
  %v135 = vsel %vm129, %v134, %v133
  %vm136 = vcmp.lt.s32.totalorder %v52, 0
  %v137 = vsub.s32 0, %v52
  %v138 = vsel %vm136, %v137, %v52
  %v139 = vshrl.u32 %v138, 5
  %v140 = vand.u32 %v138, 31
  %v141 = vsub.s32 0, %v140
  %v142 = vsel %vm136, %v141, %v140
  %vm143 = vcmp.lt.s32.totalorder %v53, 0
  %v144 = vsub.s32 0, %v53
  %v145 = vsel %vm143, %v144, %v53
  %v146 = vshrl.u32 %v145, 5
  %v147 = vand.u32 %v145, 31
  %v148 = vsub.s32 0, %v147
  %v149 = vsel %vm143, %v148, %v147
  %vm150 = vcmp.lt.s32.totalorder %v54, 0
  %v151 = vsub.s32 0, %v54
  %v152 = vsel %vm150, %v151, %v54
  %v153 = vshrl.u32 %v152, 5
  %v154 = vand.u32 %v152, 31
  %v155 = vsub.s32 0, %v154
  %v156 = vsel %vm150, %v155, %v154
  %vm157 = vcmp.lt.s32.totalorder %v55, 0
  %v158 = vsub.s32 0, %v55
  %v159 = vsel %vm157, %v158, %v55
  %v160 = vshrl.u32 %v159, 5
  %v161 = vand.u32 %v159, 31
  %v162 = vsub.s32 0, %v161
  %v163 = vsel %vm157, %v162, %v161
  %vm164 = vcmp.lt.s32.totalorder %v56, 0
  %v165 = vsub.s32 0, %v56
  %v166 = vsel %vm164, %v165, %v56
  %v167 = vshrl.u32 %v166, 5
  %v168 = vand.u32 %v166, 31
  %v169 = vsub.s32 0, %v168
  %v170 = vsel %vm164, %v169, %v168
  %vm171 = vcmp.ne.s32.totalorder %v65, 0
  %vm172 = vcmp.ne.s32.totalorder %v72, 0
  %vm173 = vcmp.ne.s32.totalorder %v79, 0
  %vm174 = vcmp.ne.s32.totalorder %v86, 0
  %vm175 = vcmp.ne.s32.totalorder %v93, 0
  %vm176 = vcmp.ne.s32.totalorder %v100, 0
  %vm177 = vcmp.ne.s32.totalorder %v107, 0
  %vm178 = vcmp.ne.s32.totalorder %v114, 0
  %vm179 = vcmp.ne.s32.totalorder %v121, 0
  %vm180 = vcmp.ne.s32.totalorder %v128, 0
  %vm181 = vcmp.ne.s32.totalorder %v135, 0
  %vm182 = vcmp.ne.s32.totalorder %v142, 0
  %vm183 = vcmp.ne.s32.totalorder %v149, 0
  %vm184 = vcmp.ne.s32.totalorder %v156, 0
  %vm185 = vcmp.ne.s32.totalorder %v163, 0
  %vm186 = vcmp.ne.s32.totalorder %v170, 0
  %vm187 = vcmp.lt.s32.totalorder %v65, 0
  %vm188 = vcmp.lt.s32.totalorder %v72, 0
  %vm189 = vcmp.lt.s32.totalorder %v79, 0
  %vm190 = vcmp.lt.s32.totalorder %v86, 0
  %vm191 = vcmp.lt.s32.totalorder %v93, 0
  %vm192 = vcmp.lt.s32.totalorder %v100, 0
  %vm193 = vcmp.lt.s32.totalorder %v107, 0
  %vm194 = vcmp.lt.s32.totalorder %v114, 0
  %vm195 = vcmp.lt.s32.totalorder %v121, 0
  %vm196 = vcmp.lt.s32.totalorder %v128, 0
  %vm197 = vcmp.lt.s32.totalorder %v135, 0
  %vm198 = vcmp.lt.s32.totalorder %v142, 0
  %vm199 = vcmp.lt.s32.totalorder %v149, 0
  %vm200 = vcmp.lt.s32.totalorder %v156, 0
  %vm201 = vcmp.lt.s32.totalorder %v163, 0
  %vm202 = vcmp.lt.s32.totalorder %v170, 0
  %vm203 = vmand %vm187, %vm171
  %vm204 = vmand %vm188, %vm172
  %vm205 = vmand %vm189, %vm173
  %vm206 = vmand %vm190, %vm174
  %vm207 = vmand %vm191, %vm175
  %vm208 = vmand %vm192, %vm176
  %vm209 = vmand %vm193, %vm177
  %vm210 = vmand %vm194, %vm178
  %vm211 = vmand %vm195, %vm179
  %vm212 = vmand %vm196, %vm180
  %vm213 = vmand %vm197, %vm181
  %vm214 = vmand %vm198, %vm182
  %vm215 = vmand %vm199, %vm183
  %vm216 = vmand %vm200, %vm184
  %vm217 = vmand %vm201, %vm185
  %vm218 = vmand %vm202, %vm186
  %v219 = vadd.s32 %v65, 32
  %v220 = vadd.s32 %v72, 32
  %v221 = vadd.s32 %v79, 32
  %v222 = vadd.s32 %v86, 32
  %v223 = vadd.s32 %v93, 32
  %v224 = vadd.s32 %v100, 32
  %v225 = vadd.s32 %v107, 32
  %v226 = vadd.s32 %v114, 32
  %v227 = vadd.s32 %v121, 32
  %v228 = vadd.s32 %v128, 32
  %v229 = vadd.s32 %v135, 32
  %v230 = vadd.s32 %v142, 32
  %v231 = vadd.s32 %v149, 32
  %v232 = vadd.s32 %v156, 32
  %v233 = vadd.s32 %v163, 32
  %v234 = vadd.s32 %v170, 32
  %v235 = vsel %vm203, %v219, %v65
  %v236 = vsel %vm204, %v220, %v72
  %v237 = vsel %vm205, %v221, %v79
  %v238 = vsel %vm206, %v222, %v86
  %v239 = vsel %vm207, %v223, %v93
  %v240 = vsel %vm208, %v224, %v100
  %v241 = vsel %vm209, %v225, %v107
  %v242 = vsel %vm210, %v226, %v114
  %v243 = vsel %vm211, %v227, %v121
  %v244 = vsel %vm212, %v228, %v128
  %v245 = vsel %vm213, %v229, %v135
  %v246 = vsel %vm214, %v230, %v142
  %v247 = vsel %vm215, %v231, %v149
  %v248 = vsel %vm216, %v232, %v156
  %v249 = vsel %vm217, %v233, %v163
  %v250 = vsel %vm218, %v234, %v170
  %vm251 = vcmp.lt.s32.totalorder %v58, 0
  %v252 = vsub.s32 0, %v58
  %v253 = vsel %vm251, %v252, %v58
  %v254 = vshrl.u32 %v253, 5
  %v255 = vand.u32 %v253, 31
  %v256 = vsub.s32 0, %v255
  %v257 = vsel %vm251, %v256, %v255
  %vm258 = vcmp.ne.s32.totalorder %v257, 0
  %vm259 = vcmp.lt.s32.totalorder %v257, 0
  %vm260 = vmand %vm259, %vm258
  %v261 = vadd.s32 %v257, 32
  %v262 = vsel %vm260, %v261, %v257
  %vm263 = vcmp.eq.s32.totalorder %v235, %v262
  %vm264 = vcmp.eq.s32.totalorder %v236, %v262
  %vm265 = vcmp.eq.s32.totalorder %v237, %v262
  %vm266 = vcmp.eq.s32.totalorder %v238, %v262
  %vm267 = vcmp.eq.s32.totalorder %v239, %v262
  %vm268 = vcmp.eq.s32.totalorder %v240, %v262
  %vm269 = vcmp.eq.s32.totalorder %v241, %v262
  %vm270 = vcmp.eq.s32.totalorder %v242, %v262
  %vm271 = vcmp.eq.s32.totalorder %v243, %v262
  %vm272 = vcmp.eq.s32.totalorder %v244, %v262
  %vm273 = vcmp.eq.s32.totalorder %v245, %v262
  %vm274 = vcmp.eq.s32.totalorder %v246, %v262
  %vm275 = vcmp.eq.s32.totalorder %v247, %v262
  %vm276 = vcmp.eq.s32.totalorder %v248, %v262
  %vm277 = vcmp.eq.s32.totalorder %v249, %v262
  %vm278 = vcmp.eq.s32.totalorder %v250, %v262
  %v279 = vsel %vm263, 1, 0
  %v280 = vsel %vm264, 1, 0
  %v281 = vsel %vm265, 1, 0
  %v282 = vsel %vm266, 1, 0
  %v283 = vsel %vm267, 1, 0
  %v284 = vsel %vm268, 1, 0
  %v285 = vsel %vm269, 1, 0
  %v286 = vsel %vm270, 1, 0
  %v287 = vsel %vm271, 1, 0
  %v288 = vsel %vm272, 1, 0
  %v289 = vsel %vm273, 1, 0
  %v290 = vsel %vm274, 1, 0
  %v291 = vsel %vm275, 1, 0
  %v292 = vsel %vm276, 1, 0
  %v293 = vsel %vm277, 1, 0
  %v294 = vsel %vm278, 1, 0
  %v295 = vcvt.s32.f32 %v279
  %v296 = vcvt.s32.f32 %v280
  %v297 = vcvt.s32.f32 %v281
  %v298 = vcvt.s32.f32 %v282
  %v299 = vcvt.s32.f32 %v283
  %v300 = vcvt.s32.f32 %v284
  %v301 = vcvt.s32.f32 %v285
  %v302 = vcvt.s32.f32 %v286
  %v303 = vcvt.s32.f32 %v287
  %v304 = vcvt.s32.f32 %v288
  %v305 = vcvt.s32.f32 %v289
  %v306 = vcvt.s32.f32 %v290
  %v307 = vcvt.s32.f32 %v291
  %v308 = vcvt.s32.f32 %v292
  %v309 = vcvt.s32.f32 %v293
  %v310 = vcvt.s32.f32 %v294
  %311 = vmatprep.subr.mxu0 0.0
  %312 = vmatpush1.msra.mxu0 %v295
  %313 = vmatprep.subr.mxu0 0.0
  %314 = vmatpush1.msra.mxu0 %v296
  %315 = vmatprep.subr.mxu0 0.0
  %316 = vmatpush1.msra.mxu0 %v297
  %317 = vmatprep.subr.mxu0 0.0
  %318 = vmatpush1.msra.mxu0 %v298
  %319 = vmatprep.subr.mxu0 0.0
  %320 = vmatpush1.msra.mxu0 %v299
  %321 = vmatprep.subr.mxu0 0.0
  %322 = vmatpush1.msra.mxu0 %v300
  %323 = vmatprep.subr.mxu0 0.0
  %324 = vmatpush1.msra.mxu0 %v301
  %325 = vmatprep.subr.mxu0 0.0
  %326 = vmatpush1.msra.mxu0 %v302
  %327 = vmatprep.subr.mxu0 0.0
  %328 = vmatpush1.msra.mxu0 %v303
  %329 = vmatprep.subr.mxu0 0.0
  %330 = vmatpush1.msra.mxu0 %v304
  %331 = vmatprep.subr.mxu0 0.0
  %332 = vmatpush1.msra.mxu0 %v305
  %333 = vmatprep.subr.mxu0 0.0
  %334 = vmatpush1.msra.mxu0 %v306
  %335 = vmatprep.subr.mxu0 0.0
  %336 = vmatpush1.msra.mxu0 %v307
  %337 = vmatprep.subr.mxu0 0.0
  %338 = vmatpush1.msra.mxu0 %v308
  %339 = vmatprep.subr.mxu0 0.0
  %340 = vmatpush1.msra.mxu0 %v309
  %341 = vmatprep.subr.mxu0 0.0
  %342 = vmatpush1.msra.mxu0 %v310
  %343 = vmatprep.subr.mxu0 0.0
  %344 = vmatpush1.msra.mxu0 0.0
  %345 = vmatprep.subr.mxu0 0.0
  %346 = vmatpush1.msra.mxu0 0.0
  %347 = vmatprep.subr.mxu0 0.0
  %348 = vmatpush1.msra.mxu0 0.0
  %349 = vmatprep.subr.mxu0 0.0
  %350 = vmatpush1.msra.mxu0 0.0
  %351 = vmatprep.subr.mxu0 0.0
  %352 = vmatpush1.msra.mxu0 0.0
  %353 = vmatprep.subr.mxu0 0.0
  %354 = vmatpush1.msra.mxu0 0.0
  %355 = vmatprep.subr.mxu0 0.0
  %356 = vmatpush1.msra.mxu0 0.0
  %357 = vmatprep.subr.mxu0 0.0
  %358 = vmatpush1.msra.mxu0 0.0
  %359 = vmatprep.subr.mxu0 0.0
  %360 = vmatpush1.msra.mxu0 0.0
  %361 = vmatprep.subr.mxu0 0.0
  %362 = vmatpush1.msra.mxu0 0.0
  %363 = vmatprep.subr.mxu0 0.0
  %364 = vmatpush1.msra.mxu0 0.0
  %365 = vmatprep.subr.mxu0 0.0
  %366 = vmatpush1.msra.mxu0 0.0
  %367 = vmatprep.subr.mxu0 0.0
  %368 = vmatpush1.msra.mxu0 0.0
  %369 = vmatprep.subr.mxu0 0.0
  %370 = vmatpush1.msra.mxu0 0.0
  %371 = vmatprep.subr.mxu0 0.0
  %372 = vmatpush1.msra.mxu0 0.0
  %373 = vmatprep.subr.mxu0 0.0
  %374 = vmatpush1.msra.mxu0 0.0
  %375 = vmatprep.mubr.f32.mxu0 0.0
  %376 = vmatmul.mubr.f32.gmra.mrb[0].mxu0 %v26
  %v377 = vpop.f32.mrb[0].mxu0
  %v378 = vadd.f32 0.0, %v377
  %v379 = vpop.f32.mrb[0].mxu0
  %380 = vdwg.mxu0
  %381 = vmatprep.subr.mxu0 0.0
  %382 = vmatpush1.msra.mxu0 %v295
  %383 = vmatprep.subr.mxu0 0.0
  %384 = vmatpush1.msra.mxu0 %v296
  %385 = vmatprep.subr.mxu0 0.0
  %386 = vmatpush1.msra.mxu0 %v297
  %387 = vmatprep.subr.mxu0 0.0
  %388 = vmatpush1.msra.mxu0 %v298
  %389 = vmatprep.subr.mxu0 0.0
  %390 = vmatpush1.msra.mxu0 %v299
  %391 = vmatprep.subr.mxu0 0.0
  %392 = vmatpush1.msra.mxu0 %v300
  %393 = vmatprep.subr.mxu0 0.0
  %394 = vmatpush1.msra.mxu0 %v301
  %395 = vmatprep.subr.mxu0 0.0
  %396 = vmatpush1.msra.mxu0 %v302
  %397 = vmatprep.subr.mxu0 0.0
  %398 = vmatpush1.msra.mxu0 %v303
  %399 = vmatprep.subr.mxu0 0.0
  %400 = vmatpush1.msra.mxu0 %v304
  %401 = vmatprep.subr.mxu0 0.0
  %402 = vmatpush1.msra.mxu0 %v305
  %403 = vmatprep.subr.mxu0 0.0
  %404 = vmatpush1.msra.mxu0 %v306
  %405 = vmatprep.subr.mxu0 0.0
  %406 = vmatpush1.msra.mxu0 %v307
  %407 = vmatprep.subr.mxu0 0.0
  %408 = vmatpush1.msra.mxu0 %v308
  %409 = vmatprep.subr.mxu0 0.0
  %410 = vmatpush1.msra.mxu0 %v309
  %411 = vmatprep.subr.mxu0 0.0
  %412 = vmatpush1.msra.mxu0 %v310
  %413 = vmatprep.subr.mxu0 0.0
  %414 = vmatpush1.msra.mxu0 0.0
  %415 = vmatprep.subr.mxu0 0.0
  %416 = vmatpush1.msra.mxu0 0.0
  %417 = vmatprep.subr.mxu0 0.0
  %418 = vmatpush1.msra.mxu0 0.0
  %419 = vmatprep.subr.mxu0 0.0
  %420 = vmatpush1.msra.mxu0 0.0
  %421 = vmatprep.subr.mxu0 0.0
  %422 = vmatpush1.msra.mxu0 0.0
  %423 = vmatprep.subr.mxu0 0.0
  %424 = vmatpush1.msra.mxu0 0.0
  %425 = vmatprep.subr.mxu0 0.0
  %426 = vmatpush1.msra.mxu0 0.0
  %427 = vmatprep.subr.mxu0 0.0
  %428 = vmatpush1.msra.mxu0 0.0
  %429 = vmatprep.subr.mxu0 0.0
  %430 = vmatpush1.msra.mxu0 0.0
  %431 = vmatprep.subr.mxu0 0.0
  %432 = vmatpush1.msra.mxu0 0.0
  %433 = vmatprep.subr.mxu0 0.0
  %434 = vmatpush1.msra.mxu0 0.0
  %435 = vmatprep.subr.mxu0 0.0
  %436 = vmatpush1.msra.mxu0 0.0
  %437 = vmatprep.subr.mxu0 0.0
  %438 = vmatpush1.msra.mxu0 0.0
  %439 = vmatprep.subr.mxu0 0.0
  %440 = vmatpush1.msra.mxu0 0.0
  %441 = vmatprep.subr.mxu0 0.0
  %442 = vmatpush1.msra.mxu0 0.0
  %443 = vmatprep.subr.mxu0 0.0
  %444 = vmatpush1.msra.mxu0 0.0
  %445 = vmatprep.mubr.f32.mxu0 0.0
  %446 = vmatmul.mubr.f32.gmra.mrb[0].mxu0 %v39
  %v447 = vpop.f32.mrb[0].mxu0
  %v448 = vadd.f32 0.0, %v447
  %v449 = vpop.f32.mrb[0].mxu0
  %450 = vdwg.mxu0
  %v451 = vrcp.pop 128.0
  %v452 = vmul.f32 %v378, %v451
  %v453 = vmul.f32 %v448, %v451
  %v454 = vmul.f32 %v452, %v452
  %v455 = vsub.f32 %v453, %v454
  %v456 = vadd.f32 %v455, 1e-05
  %v457 = vrsqrt.pop %v456
  %v458 = vld [vmem:[%s1] sm:$0x1]
  %v459 = vmul.f32 %v458, %v457
  %v460 = vld [vmem:[%s2] sm:$0x1]
  %v461 = vmul.f32 %v452, %v459
  %v462 = vsub.f32 %v460, %v461
  %v464 = vlaneseq
  %v465 = vshrl.u32 %v464, 7
  %v466 = vsub.s32 0, %v465
  %v467 = vrot.slane %v459, %v466
  %v469 = vmul.f32 %v14, %v467
  %v470 = vmul.f32 %v15, %v467
  %v471 = vmul.f32 %v16, %v467
  %v472 = vmul.f32 %v17, %v467
  %v474 = vlaneseq
  %v475 = vshrl.u32 %v474, 7
  %v476 = vsub.s32 0, %v475
  %v477 = vrot.slane %v462, %v476
  %v479 = vadd.f32 %v469, %v477
  %v480 = vadd.f32 %v470, %v477
  %v481 = vadd.f32 %v471, %v477
  %v482 = vadd.f32 %v472, %v477
  %483 = vst [vmem:[%s3] sm:$0xff] %v479
  %484 = vst [vmem:[%s3 + $0x8] sm:$0xff] %v480
  %485 = vst [vmem:[%s3 + $0x10] sm:$0xff] %v481
  %486 = vst [vmem:[%s3 + $0x18] sm:$0xff] %v482
  // Predicated region
  $region14: #{replace_batch_norm.1} parent=0 // pred_check
    _
  $region15: #{replace_batch_norm.1} parent=0 // pred_check_branch
    %488 = sbr.rel (0) target = $region17
  $region16: #{replace_batch_norm.1} parent=0 // pred_region
    _
  $region17: #{replace_batch_norm.1} parent=0 // pred_fallthru
    _
  // Predicated region
  $region18: #{replace_batch_norm.1} parent=0 // pred_check
    _
  $region19: #{replace_batch_norm.1} parent=0 // pred_check_branch
    %490 = sbr.rel (0) target = $region21
  $region20: #{replace_batch_norm.1} parent=0 // pred_region
    _
  $region21: #{replace_batch_norm.1} parent=0 // pred_fallthru
    _

</llo_original>
